<compile_context>
chip_gen: v7x
topology: tpu7x:2x2x1
jax: 0.10.0
libtpu: 0.0.40
codegen_flags: <defaults>
</compile_context>

<pallas_src>
import math
import jax
import jax.numpy as jnp
from jax.experimental import pallas as pl
from jax.experimental.pallas import tpu as pltpu

INPUT_SIZE = 32    # generator latent dim
H = 256
OUT = 784
TB = 512           # max batch tile (512 ~ 85% of HBM roofline per measured data)


def _round_up(n, m):
    return ((n + m - 1) // m) * m


def _cdiv(a, b):
    return -(-a // b)


def _pick_tb(B, tb_max=TB):
    """Pick a batch tile that bounds padding waste and prefers >=2 grid tiles."""
    ntiles = max(1, _cdiv(B, tb_max))
    tb = min(tb_max, _round_up(_cdiv(B, ntiles), 8))
    # Prefer at least 2 tiles so v7x's two TensorCores both get work.
    if _round_up(B, tb) // tb < 2 and B > 8:
        tb = max(8, _round_up(_cdiv(B, 2), 8))
    return tb


def generator_kernel(x_ref, w1_ref, b1_ref, w2_ref, b2_ref, w3_ref, b3_ref, o_ref):
    # Linear(input_size, 256) + ReLU   (bf16 MXU inputs, f32 accumulation)
    h1 = jnp.dot(x_ref[...], w1_ref[...], preferred_element_type=jnp.float32)
    h1 = jnp.maximum(h1 + b1_ref[...], 0.0)
    # Linear(256, 256) + ReLU
    h2 = jnp.dot(h1.astype(jnp.bfloat16), w2_ref[...],
                 preferred_element_type=jnp.float32)
    h2 = jnp.maximum(h2 + b2_ref[...], 0.0)
    # Linear(256, 784) + Tanh  (f32 epilogue, bf16 store)
    h3 = jnp.dot(h2.astype(jnp.bfloat16), w3_ref[...],
                 preferred_element_type=jnp.float32)
    o_ref[...] = jnp.tanh(h3 + b3_ref[...]).astype(o_ref.dtype)


def prepare_params(params):
    """One-time conversion: weights -> bf16 (MXU native); biases stay f32."""
    w1, b1, w2, b2, w3, b3 = params
    return (w1.astype(jnp.bfloat16), b1,
            w2.astype(jnp.bfloat16), b2,
            w3.astype(jnp.bfloat16), b3)


def generator_forward(x, prepared_params, tb_max=TB):
    """x: [B, INPUT_SIZE] f32 -> [B, OUT] bf16 (tanh output)."""
    w1b, b1, w2b, b2, w3b, b3 = prepared_params
    B, d_in = x.shape

    xb = x.astype(jnp.bfloat16)

    tb = _pick_tb(B, tb_max)
    b_pad = _round_up(B, tb)
    if b_pad != B:
        xb = jnp.pad(xb, ((0, b_pad - B), (0, 0)))
    num_tiles = b_pad // tb

    # Resident operands: constant index_map -> DMA'd once, kept in VMEM.
    resident = lambda shape: pl.BlockSpec(shape, lambda i: (0, 0))

    flops = 2 * b_pad * (d_in * H + H * H + H * OUT)
    bytes_accessed = (
        xb.size * 2                                        # x (bf16)
        + w1b.size * 2 + w2b.size * 2 + w3b.size * 2       # weights (bf16)
        + b1.size * 4 + b2.size * 4 + b3.size * 4          # biases (f32)
        + b_pad * OUT * 2                                  # output (bf16)
    )

    out = pl.pallas_call(
        generator_kernel,
        out_shape=jax.ShapeDtypeStruct((b_pad, OUT), jnp.bfloat16),
        grid=(num_tiles,),
        in_specs=[
            pl.BlockSpec((tb, d_in), lambda i: (i, 0)),    # x tile (pipelined)
            resident(w1b.shape), resident(b1.shape),
            resident(w2b.shape), resident(b2.shape),
            resident(w3b.shape), resident(b3.shape),
        ],
        # 784 equals the full last dim of the output array -> legal block shape;
        # only the trailing 16-lane vreg store is masked.
        out_specs=pl.BlockSpec((tb, OUT), lambda i: (i, 0)),
        compiler_params=pltpu.CompilerParams(
            dimension_semantics=("parallel",),             # shard batch tiles across TCs
        ),
        cost_estimate=pl.CostEstimate(
            flops=flops,
            transcendentals=b_pad * OUT,
            bytes_accessed=bytes_accessed,
        ),
    )(xb, w1b, b1, w2b, b2, w3b, b3)

    # Only slice rows when the batch was padded; no column slice needed.
    return out if b_pad == B else out[:B]


def init_params(key, input_size=INPUT_SIZE):
    # PyTorch nn.Linear default init: U(-1/sqrt(fan_in), 1/sqrt(fan_in))
    def linear(k, fan_in, fan_out):
        kw, kb = jax.random.split(k)
        bound = 1.0 / math.sqrt(fan_in)
        w = jax.random.uniform(kw, (fan_in, fan_out), jnp.float32, -bound, bound)
        b = jax.random.uniform(kb, (1, fan_out), jnp.float32, -bound, bound)
        return w, b

    k1, k2, k3 = jax.random.split(key, 3)
    w1, b1 = linear(k1, input_size, H)
    w2, b2 = linear(k2, H, H)
    w3, b3 = linear(k3, H, OUT)
    return (w1, b1, w2, b2, w3, b3)


def reference_forward(x, params):
    w1, b1, w2, b2, w3, b3 = params
    h1 = jnp.maximum(x @ w1 + b1, 0.0)
    h2 = jnp.maximum(h1 @ w2 + b2, 0.0)
    return jnp.tanh(h2 @ w3 + b3)


if __name__ == "__main__":
    key = jax.random.PRNGKey(0)
    kx, kp = jax.random.split(key)
    B = 8
    x = jax.random.normal(kx, (B, INPUT_SIZE), jnp.float32)
    params = init_params(kp)
    gen_params = prepare_params(params)   # one-time bf16 weight cast

    out = generator_forward(x, gen_params)
    out = jax.block_until_ready(out)

    ref = reference_forward(x, params)    # f32 reference
    assert out.shape == (B, OUT), out.shape
    assert out.dtype == jnp.bfloat16, out.dtype
    # bf16 matmul inputs + bf16 output store -> loosened tolerance vs. the
    # f32 reference (tanh outputs live in [-1, 1], so abs tol dominates).
    err = float(jnp.max(jnp.abs(out.astype(jnp.float32) - ref)))
    assert jnp.allclose(out.astype(jnp.float32), ref, atol=4e-2, rtol=4e-2), (
        "mismatch vs reference, max abs err = %g" % err
    )
    print("KERNEL_OK")
</pallas_src>

<mosaic_0001>
module attributes {stable_mosaic.version = 11 : i64} {
  func.func @generator_kernel(%arg0: i32, %arg1: memref<8x32xbf16, #tpu.memory_space<vmem>>, %arg2: memref<32x256xbf16, #tpu.memory_space<vmem>>, %arg3: memref<1x256xf32, #tpu.memory_space<vmem>>, %arg4: memref<256x256xbf16, #tpu.memory_space<vmem>>, %arg5: memref<1x256xf32, #tpu.memory_space<vmem>>, %arg6: memref<256x784xbf16, #tpu.memory_space<vmem>>, %arg7: memref<1x784xf32, #tpu.memory_space<vmem>>, %arg8: memref<8x784xbf16, #tpu.memory_space<vmem>>) attributes {dimension_semantics = [#tpu.dimension_semantics<parallel>], iteration_bounds = array<i64: 1>, scalar_prefetch = 0 : i64, scratch_operands = 0 : i64, tpu.core_type = #tpu.core_type<tc>, window_params = [{transform_indices = @transform_0, window_bounds = array<i64: 8, 32>}, {pipeline_mode = #tpu.pipeline_mode<synchronous>, transform_indices = @transform_1, window_bounds = array<i64: 32, 256>}, {pipeline_mode = #tpu.pipeline_mode<synchronous>, transform_indices = @transform_2, window_bounds = array<i64: 1, 256>}, {pipeline_mode = #tpu.pipeline_mode<synchronous>, transform_indices = @transform_3, window_bounds = array<i64: 256, 256>}, {pipeline_mode = #tpu.pipeline_mode<synchronous>, transform_indices = @transform_4, window_bounds = array<i64: 1, 256>}, {pipeline_mode = #tpu.pipeline_mode<synchronous>, transform_indices = @transform_5, window_bounds = array<i64: 256, 784>}, {pipeline_mode = #tpu.pipeline_mode<synchronous>, transform_indices = @transform_6, window_bounds = array<i64: 1, 784>}, {transform_indices = @transform_7, window_bounds = array<i64: 8, 784>}]} {
    %c0 = arith.constant 0 : index
    %c0_0 = arith.constant 0 : index
    %0 = vector.load %arg1[%c0, %c0_0] : memref<8x32xbf16, #tpu.memory_space<vmem>>, vector<8x32xbf16>
    %c0_1 = arith.constant 0 : index
    %c0_2 = arith.constant 0 : index
    %1 = vector.load %arg2[%c0_1, %c0_2] : memref<32x256xbf16, #tpu.memory_space<vmem>>, vector<32x256xbf16>
    %cst = arith.constant dense<0.000000e+00> : vector<8x256xf32>
    %2 = tpu.matmul %0, %1, %cst {dimension_numbers = #tpu.dot_dimension_numbers<[1], [0], [0], [1], [0, 0, 1, 1], [], []>} : vector<8x32xbf16>, vector<32x256xbf16>, vector<8x256xf32> -> vector<8x256xf32>
    %c0_3 = arith.constant 0 : index
    %c0_4 = arith.constant 0 : index
    %3 = vector.load %arg3[%c0_3, %c0_4] : memref<1x256xf32, #tpu.memory_space<vmem>>, vector<1x256xf32>
    %4 = vector.broadcast %3 : vector<1x256xf32> to vector<8x256xf32>
    %5 = arith.addf %2, %4 : vector<8x256xf32>
    %cst_5 = arith.constant 0.000000e+00 : f32
    %6 = vector.broadcast %cst_5 : f32 to vector<8x256xf32>
    %7 = arith.maximumf %5, %6 : vector<8x256xf32>
    %8 = arith.truncf %7 : vector<8x256xf32> to vector<8x256xbf16>
    %c0_6 = arith.constant 0 : index
    %c0_7 = arith.constant 0 : index
    %9 = vector.load %arg4[%c0_6, %c0_7] : memref<256x256xbf16, #tpu.memory_space<vmem>>, vector<256x256xbf16>
    %cst_8 = arith.constant dense<0.000000e+00> : vector<8x256xf32>
    %10 = tpu.matmul %8, %9, %cst_8 {dimension_numbers = #tpu.dot_dimension_numbers<[1], [0], [0], [1], [0, 0, 1, 1], [], []>} : vector<8x256xbf16>, vector<256x256xbf16>, vector<8x256xf32> -> vector<8x256xf32>
    %c0_9 = arith.constant 0 : index
    %c0_10 = arith.constant 0 : index
    %11 = vector.load %arg5[%c0_9, %c0_10] : memref<1x256xf32, #tpu.memory_space<vmem>>, vector<1x256xf32>
    %12 = vector.broadcast %11 : vector<1x256xf32> to vector<8x256xf32>
    %13 = arith.addf %10, %12 : vector<8x256xf32>
    %cst_11 = arith.constant 0.000000e+00 : f32
    %14 = vector.broadcast %cst_11 : f32 to vector<8x256xf32>
    %15 = arith.maximumf %13, %14 : vector<8x256xf32>
    %16 = arith.truncf %15 : vector<8x256xf32> to vector<8x256xbf16>
    %c0_12 = arith.constant 0 : index
    %c0_13 = arith.constant 0 : index
    %17 = vector.load %arg6[%c0_12, %c0_13] : memref<256x784xbf16, #tpu.memory_space<vmem>>, vector<256x784xbf16>
    %cst_14 = arith.constant dense<0.000000e+00> : vector<8x784xf32>
    %18 = tpu.matmul %16, %17, %cst_14 {dimension_numbers = #tpu.dot_dimension_numbers<[1], [0], [0], [1], [0, 0, 1, 1], [], []>} : vector<8x256xbf16>, vector<256x784xbf16>, vector<8x784xf32> -> vector<8x784xf32>
    %c0_15 = arith.constant 0 : index
    %c0_16 = arith.constant 0 : index
    %19 = vector.load %arg7[%c0_15, %c0_16] : memref<1x784xf32, #tpu.memory_space<vmem>>, vector<1x784xf32>
    %20 = vector.broadcast %19 : vector<1x784xf32> to vector<8x784xf32>
    %21 = arith.addf %18, %20 : vector<8x784xf32>
    %22 = math.tanh %21 : vector<8x784xf32>
    %23 = arith.truncf %22 : vector<8x784xf32> to vector<8x784xbf16>
    %c0_17 = arith.constant 0 : index
    %c0_18 = arith.constant 0 : index
    %24 = vector.load %arg8[%c0_17, %c0_18] : memref<8x784xbf16, #tpu.memory_space<vmem>>, vector<8x784xbf16>
    tpu.vector_store %arg8[%c0_17, %c0_18], %23 {strides = array<i32>} : memref<8x784xbf16, #tpu.memory_space<vmem>>, vector<8x784xbf16>,
    return
  }
  func.func @transform_0(%arg0: i32) -> (i32, i32) {
    %c0_i32 = arith.constant 0 : i32
    %c0_i32_0 = arith.constant 0 : i32
    return %arg0, %c0_i32 : i32, i32
  }
  func.func @transform_1(%arg0: i32) -> (i32, i32) {
    %c0_i32 = arith.constant 0 : i32
    %c0_i32_0 = arith.constant 0 : i32
    %c0_i32_1 = arith.constant 0 : i32
    return %c0_i32, %c0_i32_0 : i32, i32
  }
  func.func @transform_2(%arg0: i32) -> (i32, i32) {
    %c0_i32 = arith.constant 0 : i32
    %c0_i32_0 = arith.constant 0 : i32
    %c0_i32_1 = arith.constant 0 : i32
    return %c0_i32, %c0_i32_0 : i32, i32
  }
  func.func @transform_3(%arg0: i32) -> (i32, i32) {
    %c0_i32 = arith.constant 0 : i32
    %c0_i32_0 = arith.constant 0 : i32
    %c0_i32_1 = arith.constant 0 : i32
    return %c0_i32, %c0_i32_0 : i32, i32
  }
  func.func @transform_4(%arg0: i32) -> (i32, i32) {
    %c0_i32 = arith.constant 0 : i32
    %c0_i32_0 = arith.constant 0 : i32
    %c0_i32_1 = arith.constant 0 : i32
    return %c0_i32, %c0_i32_0 : i32, i32
  }
  func.func @transform_5(%arg0: i32) -> (i32, i32) {
    %c0_i32 = arith.constant 0 : i32
    %c0_i32_0 = arith.constant 0 : i32
    %c0_i32_1 = arith.constant 0 : i32
    return %c0_i32, %c0_i32_0 : i32, i32
  }
  func.func @transform_6(%arg0: i32) -> (i32, i32) {
    %c0_i32 = arith.constant 0 : i32
    %c0_i32_0 = arith.constant 0 : i32
    %c0_i32_1 = arith.constant 0 : i32
    return %c0_i32, %c0_i32_0 : i32, i32
  }
  func.func @transform_7(%arg0: i32) -> (i32, i32) {
    %c0_i32 = arith.constant 0 : i32
    %c0_i32_0 = arith.constant 0 : i32
    return %arg0, %c0_i32 : i32, i32
  }
}

</mosaic_0001>

<llo_original>
// kernel: tpu_custom_call.1
$region0: #{tpu_custom_call.1}
  #allocation0 [shape = 'u32[]', space=smem, size = 0x4, offset = 0x4, fixed_abs, tag = 'smem constant byte address 0x4 - core index']
  #allocation1 [shape = 'u32[144,128]{1,0:T(1,128)}', space=vmem, size = 0x12000, scoped, tag = 'internal scratch']
  %s0 = inlined_call_operand.vmem [shape: bf16[8,32], index: 0, kind: input, shape index: {}]
  %s1 = inlined_call_operand.vmem [shape: bf16[32,256], index: 1, kind: input, shape index: {}]
  %s2 = inlined_call_operand.vmem [shape: f32[1,256], index: 2, kind: input, shape index: {}]
  %s3 = inlined_call_operand.vmem [shape: bf16[256,256], index: 3, kind: input, shape index: {}]
  %s4 = inlined_call_operand.vmem [shape: f32[1,256], index: 4, kind: input, shape index: {}]
  %s5 = inlined_call_operand.vmem [shape: bf16[256,784], index: 5, kind: input, shape index: {}]
  %s6 = inlined_call_operand.vmem [shape: f32[1,784], index: 6, kind: input, shape index: {}]
  %s7 = inlined_call_operand.hbm [shape: bf16[8,784], index: 7, kind: output, shape index: {}]
  %s8 = sld [smem:[#allocation0]]
  $region38: #{tpu_custom_call.1} parent=0
    _
  %s10 = ssub.s32 1, %s8
  %s11 = scalar_select 0, %s10, %s8
  $region1: #{tpu_custom_call.1} parent=0
    #allocation2 [shape = 'u8[14336]{0}', space=vmem, size = 0x3800, scoped, tag = 'output window, operand 0, single buffered']
    #allocation3 [shape = 's32[1]{0}', space=sflag, size = 0x4, scoped, tag = 'scoped memory for tpu_custom_call.1']
    %12 = vsyncpa [#allocation3], 0
    // Predicated region
    $region2: #{tpu_custom_call.1} parent=1 // pred_check
      _
    $region3: #{tpu_custom_call.1} parent=1 // pred_check_branch
      %14 = sbr.rel (0) target = $region5
    $region4: #{tpu_custom_call.1} parent=1 // pred_region
      _
    $region5: #{tpu_custom_call.1} parent=1 // pred_fallthru
      _
    // Predicated region
    $region6: #{tpu_custom_call.1} parent=1 // pred_check
      _
    $region7: #{tpu_custom_call.1} parent=1 // pred_check_branch
      %16 = sbr.rel (0) target = $region9
    $region8: #{tpu_custom_call.1} parent=1 // pred_region
      _
    $region9: #{tpu_custom_call.1} parent=1 // pred_fallthru
      _
    // Predicated region
    $region10: #{tpu_custom_call.1} parent=1 // pred_check
      _
    $region11: #{tpu_custom_call.1} parent=1 // pred_check_branch
      %18 = sbr.rel (0) target = $region13
    $region12: #{tpu_custom_call.1} parent=1 // pred_region
      _
    $region13: #{tpu_custom_call.1} parent=1 // pred_fallthru
      _
    // Predicated region
    $region14: #{tpu_custom_call.1} parent=1 // pred_check
      _
    $region15: #{tpu_custom_call.1} parent=1 // pred_check_branch
      %20 = sbr.rel (0) target = $region17
    $region16: #{tpu_custom_call.1} parent=1 // pred_region
      _
    $region17: #{tpu_custom_call.1} parent=1 // pred_fallthru
      _
    // Predicated region
    $region18: #{tpu_custom_call.1} parent=1 // pred_check
      _
    $region19: #{tpu_custom_call.1} parent=1 // pred_check_branch
      %22 = sbr.rel (0) target = $region21
    $region20: #{tpu_custom_call.1} parent=1 // pred_region
      _
    $region21: #{tpu_custom_call.1} parent=1 // pred_fallthru
      _
    // Predicated region
    $region22: #{tpu_custom_call.1} parent=1 // pred_check
      _
    $region23: #{tpu_custom_call.1} parent=1 // pred_check_branch
      %24 = sbr.rel (0) target = $region25
    $region24: #{tpu_custom_call.1} parent=1 // pred_region
      _
    $region25: #{tpu_custom_call.1} parent=1 // pred_fallthru
      _
    // Predicated region
    $region26: #{tpu_custom_call.1} parent=1 // pred_check
      _
    $region27: #{tpu_custom_call.1} parent=1 // pred_check_branch
      %26 = sbr.rel (0) target = $region29
    $region28: #{tpu_custom_call.1} parent=1 // pred_region
      _
    $region29: #{tpu_custom_call.1} parent=1 // pred_fallthru
      _
    %v28 = vld [vmem:[%s0] sm:$0xf]
    %v29 = vld [vmem:[%s1] sm:$0xff]
    %v30 = vld [vmem:[%s1 + $0x8] sm:$0xff]
    %v31 = vld [vmem:[%s1 + $0x10] sm:$0xff]
    %v32 = vld [vmem:[%s1 + $0x18] sm:$0xff]
    %v33 = vld [vmem:[%s2] sm:$0x3]
    %v35 = vlaneseq
    %v36 = vshrl.u32 %v35, 7
    %v37 = vsub.s32 0, %v36
    %v38 = vrot.slane %v33, %v37
    %v39 = vlaneseq
    %v40 = vshrl.u32 %v39, 7
    %v41 = vsub.s32 1, %v40
    %v42 = vrot.slane %v33, %v41
    %v49 = vunpack.c.l.b16 %v29
    %v50 = vunpack.c.h.b16 %v29
    %v51 = vunpack.c.l.b16 %v30
    %v52 = vunpack.c.h.b16 %v30
    %v53 = vunpack.c.l.b16 %v31
    %v54 = vunpack.c.h.b16 %v31
    %v55 = vunpack.c.l.b16 %v32
    %v56 = vunpack.c.h.b16 %v32
    %v57 = vpack.c.b16 %v51, %v49
    %v58 = vpack.c.b16 %v52, %v50
    %v59 = vpack.c.b16 %v55, %v53
    %v60 = vpack.c.b16 %v56, %v54
    %vm65 = vcmask 261120
    %v67 = vsel %vm65, %v28, 0
    %69 = vmatprep.subr.bf16.mxu0 %v58
    %70 = vmatpush1.bf16.msra.mxu0 %v57
    %71 = vmatprep.subr.bf16.mxu0 %v60
    %72 = vmatpush1.bf16.msra.mxu0 %v59
    %73 = vmatprep.subr.bf16.mxu0 0
    %74 = vmatpush1.bf16.msra.mxu0 0
    %75 = vmatprep.subr.bf16.mxu0 0
    %76 = vmatpush1.bf16.msra.mxu0 0
    %77 = vmatprep.subr.bf16.mxu0 0
    %78 = vmatpush1.bf16.msra.mxu0 0
    %79 = vmatprep.subr.bf16.mxu0 0
    %80 = vmatpush1.bf16.msra.mxu0 0
    %81 = vmatprep.subr.bf16.mxu0 0
    %82 = vmatpush1.bf16.msra.mxu0 0
    %83 = vmatprep.subr.bf16.mxu0 0
    %84 = vmatpush1.bf16.msra.mxu0 0
    %85 = vmatprep.subr.bf16.mxu0 0
    %86 = vmatpush1.bf16.msra.mxu0 0
    %87 = vmatprep.subr.bf16.mxu0 0
    %88 = vmatpush1.bf16.msra.mxu0 0
    %89 = vmatprep.subr.bf16.mxu0 0
    %90 = vmatpush1.bf16.msra.mxu0 0
    %91 = vmatprep.subr.bf16.mxu0 0
    %92 = vmatpush1.bf16.msra.mxu0 0
    %93 = vmatprep.subr.bf16.mxu0 0
    %94 = vmatpush1.bf16.msra.mxu0 0
    %95 = vmatprep.subr.bf16.mxu0 0
    %96 = vmatpush1.bf16.msra.mxu0 0
    %97 = vmatprep.subr.bf16.mxu0 0
    %98 = vmatpush1.bf16.msra.mxu0 0
    %99 = vmatprep.subr.bf16.mxu0 0
    %100 = vmatpush1.bf16.msra.mxu0 0
    %101 = vmatprep.mubr.bf16.mxu0 0
    %102 = vmatmul.mubr.bf16.gmra.mrb[0].mxu0 %v67
    %v103 = vpop.f32.mrb[0].mxu0
    %v104 = vadd.f32 %v38, %v103
    %v105 = vpop.f32.mrb[0].mxu0
    %v106 = vadd.f32 %v42, %v105
    %v107 = vpop.f32.mrb[0].mxu0
    %v108 = vpop.f32.mrb[0].mxu0
    %109 = vdwg.mxu0
    %v110 = vmax.f32 %v104, 0.0
    %v111 = vmax.f32 %v106, 0.0
    %v112 = vpack.c.bf16 %v110, %v110
    %v113 = vpack.c.bf16 %v111, %v111
    %v114 = vld [vmem:[%s3] sm:$0xff]
    %v115 = vld [vmem:[%s3 + $0x8] sm:$0xff]
    %v116 = vld [vmem:[%s3 + $0x10] sm:$0xff]
    %v117 = vld [vmem:[%s3 + $0x18] sm:$0xff]
    %v118 = vld [vmem:[%s3 + $0x20] sm:$0xff]
    %v119 = vld [vmem:[%s3 + $0x28] sm:$0xff]
    %v120 = vld [vmem:[%s3 + $0x30] sm:$0xff]
    %v121 = vld [vmem:[%s3 + $0x38] sm:$0xff]
    %v122 = vld [vmem:[%s3 + $0x40] sm:$0xff]
    %v123 = vld [vmem:[%s3 + $0x48] sm:$0xff]
    %v124 = vld [vmem:[%s3 + $0x50] sm:$0xff]
    %v125 = vld [vmem:[%s3 + $0x58] sm:$0xff]
    %v126 = vld [vmem:[%s3 + $0x60] sm:$0xff]
    %v127 = vld [vmem:[%s3 + $0x68] sm:$0xff]
    %v128 = vld [vmem:[%s3 + $0x70] sm:$0xff]
    %v129 = vld [vmem:[%s3 + $0x78] sm:$0xff]
    %v130 = vld [vmem:[%s3 + $0x80] sm:$0xff]
    %v131 = vld [vmem:[%s3 + $0x88] sm:$0xff]
    %v132 = vld [vmem:[%s3 + $0x90] sm:$0xff]
    %v133 = vld [vmem:[%s3 + $0x98] sm:$0xff]
    %v134 = vld [vmem:[%s3 + $0xa0] sm:$0xff]
    %v135 = vld [vmem:[%s3 + $0xa8] sm:$0xff]
    %v136 = vld [vmem:[%s3 + $0xb0] sm:$0xff]
    %v137 = vld [vmem:[%s3 + $0xb8] sm:$0xff]
    %v138 = vld [vmem:[%s3 + $0xc0] sm:$0xff]
    %v139 = vld [vmem:[%s3 + $0xc8] sm:$0xff]
    %v140 = vld [vmem:[%s3 + $0xd0] sm:$0xff]
    %v141 = vld [vmem:[%s3 + $0xd8] sm:$0xff]
    %v142 = vld [vmem:[%s3 + $0xe0] sm:$0xff]
    %v143 = vld [vmem:[%s3 + $0xe8] sm:$0xff]
    %v144 = vld [vmem:[%s3 + $0xf0] sm:$0xff]
    %v145 = vld [vmem:[%s3 + $0xf8] sm:$0xff]
    %v146 = vld [vmem:[%s4] sm:$0x3]
    %v148 = vlaneseq
    %v149 = vshrl.u32 %v148, 7
    %v150 = vsub.s32 0, %v149
    %v151 = vrot.slane %v146, %v150
    %v152 = vlaneseq
    %v153 = vshrl.u32 %v152, 7
    %v154 = vsub.s32 1, %v153
    %v155 = vrot.slane %v146, %v154
    %v190 = vunpack.c.l.b16 %v114
    %v191 = vunpack.c.h.b16 %v114
    %v192 = vunpack.c.l.b16 %v115
    %v193 = vunpack.c.h.b16 %v115
    %v194 = vunpack.c.l.b16 %v116
    %v195 = vunpack.c.h.b16 %v116
    %v196 = vunpack.c.l.b16 %v117
    %v197 = vunpack.c.h.b16 %v117
    %v198 = vunpack.c.l.b16 %v118
    %v199 = vunpack.c.h.b16 %v118
    %v200 = vunpack.c.l.b16 %v119
    %v201 = vunpack.c.h.b16 %v119
    %v202 = vunpack.c.l.b16 %v120
    %v203 = vunpack.c.h.b16 %v120
    %v204 = vunpack.c.l.b16 %v121
    %v205 = vunpack.c.h.b16 %v121
    %v206 = vunpack.c.l.b16 %v122
    %v207 = vunpack.c.h.b16 %v122
    %v208 = vunpack.c.l.b16 %v123
    %v209 = vunpack.c.h.b16 %v123
    %v210 = vunpack.c.l.b16 %v124
    %v211 = vunpack.c.h.b16 %v124
    %v212 = vunpack.c.l.b16 %v125
    %v213 = vunpack.c.h.b16 %v125
    %v214 = vunpack.c.l.b16 %v126
    %v215 = vunpack.c.h.b16 %v126
    %v216 = vunpack.c.l.b16 %v127
    %v217 = vunpack.c.h.b16 %v127
    %v218 = vunpack.c.l.b16 %v128
    %v219 = vunpack.c.h.b16 %v128
    %v220 = vunpack.c.l.b16 %v129
    %v221 = vunpack.c.h.b16 %v129
    %v222 = vunpack.c.l.b16 %v130
    %v223 = vunpack.c.h.b16 %v130
    %v224 = vunpack.c.l.b16 %v131
    %v225 = vunpack.c.h.b16 %v131
    %v226 = vunpack.c.l.b16 %v132
    %v227 = vunpack.c.h.b16 %v132
    %v228 = vunpack.c.l.b16 %v133
    %v229 = vunpack.c.h.b16 %v133
    %v230 = vunpack.c.l.b16 %v134
    %v231 = vunpack.c.h.b16 %v134
    %v232 = vunpack.c.l.b16 %v135
    %v233 = vunpack.c.h.b16 %v135
    %v234 = vunpack.c.l.b16 %v136
    %v235 = vunpack.c.h.b16 %v136
    %v236 = vunpack.c.l.b16 %v137
    %v237 = vunpack.c.h.b16 %v137
    %v238 = vunpack.c.l.b16 %v138
    %v239 = vunpack.c.h.b16 %v138
    %v240 = vunpack.c.l.b16 %v139
    %v241 = vunpack.c.h.b16 %v139
    %v242 = vunpack.c.l.b16 %v140
    %v243 = vunpack.c.h.b16 %v140
    %v244 = vunpack.c.l.b16 %v141
    %v245 = vunpack.c.h.b16 %v141
    %v246 = vunpack.c.l.b16 %v142
    %v247 = vunpack.c.h.b16 %v142
    %v248 = vunpack.c.l.b16 %v143
    %v249 = vunpack.c.h.b16 %v143
    %v250 = vunpack.c.l.b16 %v144
    %v251 = vunpack.c.h.b16 %v144
    %v252 = vunpack.c.l.b16 %v145
    %v253 = vunpack.c.h.b16 %v145
    %v254 = vpack.c.b16 %v192, %v190
    %v255 = vpack.c.b16 %v193, %v191
    %v256 = vpack.c.b16 %v196, %v194
    %v257 = vpack.c.b16 %v197, %v195
    %v258 = vpack.c.b16 %v200, %v198
    %v259 = vpack.c.b16 %v201, %v199
    %v260 = vpack.c.b16 %v204, %v202
    %v261 = vpack.c.b16 %v205, %v203
    %v262 = vpack.c.b16 %v208, %v206
    %v263 = vpack.c.b16 %v209, %v207
    %v264 = vpack.c.b16 %v212, %v210
    %v265 = vpack.c.b16 %v213, %v211
    %v266 = vpack.c.b16 %v216, %v214
    %v267 = vpack.c.b16 %v217, %v215
    %v268 = vpack.c.b16 %v220, %v218
    %v269 = vpack.c.b16 %v221, %v219
    %v270 = vpack.c.b16 %v224, %v222
    %v271 = vpack.c.b16 %v225, %v223
    %v272 = vpack.c.b16 %v228, %v226
    %v273 = vpack.c.b16 %v229, %v227
    %v274 = vpack.c.b16 %v232, %v230
    %v275 = vpack.c.b16 %v233, %v231
    %v276 = vpack.c.b16 %v236, %v234
    %v277 = vpack.c.b16 %v237, %v235
    %v278 = vpack.c.b16 %v240, %v238
    %v279 = vpack.c.b16 %v241, %v239
    %v280 = vpack.c.b16 %v244, %v242
    %v281 = vpack.c.b16 %v245, %v243
    %v282 = vpack.c.b16 %v248, %v246
    %v283 = vpack.c.b16 %v249, %v247
    %v284 = vpack.c.b16 %v252, %v250
    %v285 = vpack.c.b16 %v253, %v251
    %318 = vmatprep.subr.bf16.mxu0 %v255
    %319 = vmatpush1.bf16.msra.mxu0 %v254
    %320 = vmatprep.subr.bf16.mxu0 %v257
    %321 = vmatpush1.bf16.msra.mxu0 %v256
    %322 = vmatprep.subr.bf16.mxu0 %v259
    %323 = vmatpush1.bf16.msra.mxu0 %v258
    %324 = vmatprep.subr.bf16.mxu0 %v261
    %325 = vmatpush1.bf16.msra.mxu0 %v260
    %326 = vmatprep.subr.bf16.mxu0 %v263
    %327 = vmatpush1.bf16.msra.mxu0 %v262
    %328 = vmatprep.subr.bf16.mxu0 %v265
    %329 = vmatpush1.bf16.msra.mxu0 %v264
    %330 = vmatprep.subr.bf16.mxu0 %v267
    %331 = vmatpush1.bf16.msra.mxu0 %v266
    %332 = vmatprep.subr.bf16.mxu0 %v269
    %333 = vmatpush1.bf16.msra.mxu0 %v268
    %334 = vmatprep.subr.bf16.mxu0 %v271
    %335 = vmatpush1.bf16.msra.mxu0 %v270
    %336 = vmatprep.subr.bf16.mxu0 %v273
    %337 = vmatpush1.bf16.msra.mxu0 %v272
    %338 = vmatprep.subr.bf16.mxu0 %v275
    %339 = vmatpush1.bf16.msra.mxu0 %v274
    %340 = vmatprep.subr.bf16.mxu0 %v277
    %341 = vmatpush1.bf16.msra.mxu0 %v276
    %342 = vmatprep.subr.bf16.mxu0 %v279
    %343 = vmatpush1.bf16.msra.mxu0 %v278
    %344 = vmatprep.subr.bf16.mxu0 %v281
    %345 = vmatpush1.bf16.msra.mxu0 %v280
    %346 = vmatprep.subr.bf16.mxu0 %v283
    %347 = vmatpush1.bf16.msra.mxu0 %v282
    %348 = vmatprep.subr.bf16.mxu0 %v285
    %349 = vmatpush1.bf16.msra.mxu0 %v284
    %350 = vmatprep.mubr.bf16.mxu0 %v113
    %351 = vmatmul.mubr.bf16.gmra.mrb[0].mxu0 %v112
    %v352 = vpop.f32.mrb[0].mxu0
    %v353 = vadd.f32 %v151, %v352
    %v354 = vpop.f32.mrb[0].mxu0
    %v355 = vadd.f32 %v155, %v354
    %v356 = vpop.f32.mrb[0].mxu0
    %v357 = vpop.f32.mrb[0].mxu0
    %358 = vdwg.mxu0
    %v359 = vmax.f32 %v353, 0.0
    %v360 = vmax.f32 %v355, 0.0
    %v361 = vpack.c.bf16 %v359, %v359
    %v362 = vpack.c.bf16 %v360, %v360
    %v363 = vld [vmem:[%s5] sm:$0xff]
    %v364 = vld [vmem:[%s5 + $0x8] sm:$0xff]
    %v365 = vld [vmem:[%s5 + $0x10] sm:$0xff]
    %v366 = vld [vmem:[%s5 + $0x18] sm:$0xf]
    %v367 = vld [vmem:[%s5 + $0x1c] sm:$0xff]
    %v368 = vld [vmem:[%s5 + $0x24] sm:$0xff]
    %v369 = vld [vmem:[%s5 + $0x2c] sm:$0xff]
    %v370 = vld [vmem:[%s5 + $0x34] sm:$0xf]
    %v371 = vld [vmem:[%s5 + $0x38] sm:$0xff]
    %v372 = vld [vmem:[%s5 + $0x40] sm:$0xff]
    %v373 = vld [vmem:[%s5 + $0x48] sm:$0xff]
    %v374 = vld [vmem:[%s5 + $0x50] sm:$0xf]
    %v375 = vld [vmem:[%s5 + $0x54] sm:$0xff]
    %v376 = vld [vmem:[%s5 + $0x5c] sm:$0xff]
    %v377 = vld [vmem:[%s5 + $0x64] sm:$0xff]
    %v378 = vld [vmem:[%s5 + $0x6c] sm:$0xf]
    %v379 = vld [vmem:[%s5 + $0x70] sm:$0xff]
    %v380 = vld [vmem:[%s5 + $0x78] sm:$0xff]
    %v381 = vld [vmem:[%s5 + $0x80] sm:$0xff]
    %v382 = vld [vmem:[%s5 + $0x88] sm:$0xf]
    %v383 = vld [vmem:[%s5 + $0x8c] sm:$0xff]
    %v384 = vld [vmem:[%s5 + $0x94] sm:$0xff]
    %v385 = vld [vmem:[%s5 + $0x9c] sm:$0xff]
    %v386 = vld [vmem:[%s5 + $0xa4] sm:$0xf]
    %v387 = vld [vmem:[%s5 + $0xa8] sm:$0xff]
    %v388 = vld [vmem:[%s5 + $0xb0] sm:$0xff]
    %v389 = vld [vmem:[%s5 + $0xb8] sm:$0xff]
    %v390 = vld [vmem:[%s5 + $0xc0] sm:$0xf]
    %v391 = vld [vmem:[%s5 + $0xc4] sm:$0xff]
    %v392 = vld [vmem:[%s5 + $0xcc] sm:$0xff]
    %v393 = vld [vmem:[%s5 + $0xd4] sm:$0xff]
    %v394 = vld [vmem:[%s5 + $0xdc] sm:$0xf]
    %v395 = vld [vmem:[%s5 + $0xe0] sm:$0xff]
    %v396 = vld [vmem:[%s5 + $0xe8] sm:$0xff]
    %v397 = vld [vmem:[%s5 + $0xf0] sm:$0xff]
    %v398 = vld [vmem:[%s5 + $0xf8] sm:$0xf]
    %v399 = vld [vmem:[%s5 + $0xfc] sm:$0xff]
    %v400 = vld [vmem:[%s5 + $0x104] sm:$0xff]
    %v401 = vld [vmem:[%s5 + $0x10c] sm:$0xff]
    %v402 = vld [vmem:[%s5 + $0x114] sm:$0xf]
    %v403 = vld [vmem:[%s5 + $0x118] sm:$0xff]
    %v404 = vld [vmem:[%s5 + $0x120] sm:$0xff]
    %v405 = vld [vmem:[%s5 + $0x128] sm:$0xff]
    %v406 = vld [vmem:[%s5 + $0x130] sm:$0xf]
    %v407 = vld [vmem:[%s5 + $0x134] sm:$0xff]
    %v408 = vld [vmem:[%s5 + $0x13c] sm:$0xff]
    %v409 = vld [vmem:[%s5 + $0x144] sm:$0xff]
    %v410 = vld [vmem:[%s5 + $0x14c] sm:$0xf]
    %v411 = vld [vmem:[%s5 + $0x150] sm:$0xff]
    %v412 = vld [vmem:[%s5 + $0x158] sm:$0xff]
    %v413 = vld [vmem:[%s5 + $0x160] sm:$0xff]
    %v414 = vld [vmem:[%s5 + $0x168] sm:$0xf]
    %v415 = vld [vmem:[%s5 + $0x16c] sm:$0xff]
    %v416 = vld [vmem:[%s5 + $0x174] sm:$0xff]
    %v417 = vld [vmem:[%s5 + $0x17c] sm:$0xff]
    %v418 = vld [vmem:[%s5 + $0x184] sm:$0xf]
    %v419 = vld [vmem:[%s5 + $0x188] sm:$0xff]
    %v420 = vld [vmem:[%s5 + $0x190] sm:$0xff]
    %v421 = vld [vmem:[%s5 + $0x198] sm:$0xff]
    %v422 = vld [vmem:[%s5 + $0x1a0] sm:$0xf]
    %v423 = vld [vmem:[%s5 + $0x1a4] sm:$0xff]
    %v424 = vld [vmem:[%s5 + $0x1ac] sm:$0xff]
    %v425 = vld [vmem:[%s5 + $0x1b4] sm:$0xff]
    %v426 = vld [vmem:[%s5 + $0x1bc] sm:$0xf]
    %v427 = vld [vmem:[%s5 + $0x1c0] sm:$0xff]
    %v428 = vld [vmem:[%s5 + $0x1c8] sm:$0xff]
    %v429 = vld [vmem:[%s5 + $0x1d0] sm:$0xff]
    %v430 = vld [vmem:[%s5 + $0x1d8] sm:$0xf]
    %v431 = vld [vmem:[%s5 + $0x1dc] sm:$0xff]
    %v432 = vld [vmem:[%s5 + $0x1e4] sm:$0xff]
    %v433 = vld [vmem:[%s5 + $0x1ec] sm:$0xff]
    %v434 = vld [vmem:[%s5 + $0x1f4] sm:$0xf]
    %v435 = vld [vmem:[%s5 + $0x1f8] sm:$0xff]
    %v436 = vld [vmem:[%s5 + $0x200] sm:$0xff]
    %v437 = vld [vmem:[%s5 + $0x208] sm:$0xff]
    %v438 = vld [vmem:[%s5 + $0x210] sm:$0xf]
    %v439 = vld [vmem:[%s5 + $0x214] sm:$0xff]
    %v440 = vld [vmem:[%s5 + $0x21c] sm:$0xff]
    %v441 = vld [vmem:[%s5 + $0x224] sm:$0xff]
    %v442 = vld [vmem:[%s5 + $0x22c] sm:$0xf]
    %v443 = vld [vmem:[%s5 + $0x230] sm:$0xff]
    %v444 = vld [vmem:[%s5 + $0x238] sm:$0xff]
    %v445 = vld [vmem:[%s5 + $0x240] sm:$0xff]
    %v446 = vld [vmem:[%s5 + $0x248] sm:$0xf]
    %v447 = vld [vmem:[%s5 + $0x24c] sm:$0xff]
    %v448 = vld [vmem:[%s5 + $0x254] sm:$0xff]
    %v449 = vld [vmem:[%s5 + $0x25c] sm:$0xff]
    %v450 = vld [vmem:[%s5 + $0x264] sm:$0xf]
    %v451 = vld [vmem:[%s5 + $0x268] sm:$0xff]
    %v452 = vld [vmem:[%s5 + $0x270] sm:$0xff]
    %v453 = vld [vmem:[%s5 + $0x278] sm:$0xff]
    %v454 = vld [vmem:[%s5 + $0x280] sm:$0xf]
    %v455 = vld [vmem:[%s5 + $0x284] sm:$0xff]
    %v456 = vld [vmem:[%s5 + $0x28c] sm:$0xff]
    %v457 = vld [vmem:[%s5 + $0x294] sm:$0xff]
    %v458 = vld [vmem:[%s5 + $0x29c] sm:$0xf]
    %v459 = vld [vmem:[%s5 + $0x2a0] sm:$0xff]
    %v460 = vld [vmem:[%s5 + $0x2a8] sm:$0xff]
    %v461 = vld [vmem:[%s5 + $0x2b0] sm:$0xff]
    %v462 = vld [vmem:[%s5 + $0x2b8] sm:$0xf]
    %v463 = vld [vmem:[%s5 + $0x2bc] sm:$0xff]
    %v464 = vld [vmem:[%s5 + $0x2c4] sm:$0xff]
    %v465 = vld [vmem:[%s5 + $0x2cc] sm:$0xff]
    %v466 = vld [vmem:[%s5 + $0x2d4] sm:$0xf]
    %v467 = vld [vmem:[%s5 + $0x2d8] sm:$0xff]
    %v468 = vld [vmem:[%s5 + $0x2e0] sm:$0xff]
    %v469 = vld [vmem:[%s5 + $0x2e8] sm:$0xff]
    %v470 = vld [vmem:[%s5 + $0x2f0] sm:$0xf]
    %v471 = vld [vmem:[%s5 + $0x2f4] sm:$0xff]
    %v472 = vld [vmem:[%s5 + $0x2fc] sm:$0xff]
    %v473 = vld [vmem:[%s5 + $0x304] sm:$0xff]
    %v474 = vld [vmem:[%s5 + $0x30c] sm:$0xf]
    %v475 = vld [vmem:[%s5 + $0x310] sm:$0xff]
    %v476 = vld [vmem:[%s5 + $0x318] sm:$0xff]
    %v477 = vld [vmem:[%s5 + $0x320] sm:$0xff]
    %v478 = vld [vmem:[%s5 + $0x328] sm:$0xf]
    %v479 = vld [vmem:[%s5 + $0x32c] sm:$0xff]
    %v480 = vld [vmem:[%s5 + $0x334] sm:$0xff]
    %v481 = vld [vmem:[%s5 + $0x33c] sm:$0xff]
    %v482 = vld [vmem:[%s5 + $0x344] sm:$0xf]
    %v483 = vld [vmem:[%s5 + $0x348] sm:$0xff]
    %v484 = vld [vmem:[%s5 + $0x350] sm:$0xff]
    %v485 = vld [vmem:[%s5 + $0x358] sm:$0xff]
    %v486 = vld [vmem:[%s5 + $0x360] sm:$0xf]
    %v487 = vld [vmem:[%s5 + $0x364] sm:$0xff]
    %v488 = vld [vmem:[%s5 + $0x36c] sm:$0xff]
    %v489 = vld [vmem:[%s5 + $0x374] sm:$0xff]
    %v490 = vld [vmem:[%s5 + $0x37c] sm:$0xf]
    %v491 = vld [vmem:[%s6] sm:$0x7f]
    %v493 = vlaneseq
    %v494 = vshrl.u32 %v493, 7
    %v495 = vsub.s32 0, %v494
    %v496 = vrot.slane %v491, %v495
    %v497 = vlaneseq
    %v498 = vshrl.u32 %v497, 7
    %v499 = vsub.s32 1, %v498
    %v500 = vrot.slane %v491, %v499
    %v501 = vlaneseq
    %v502 = vshrl.u32 %v501, 7
    %v503 = vsub.s32 2, %v502
    %v504 = vrot.slane %v491, %v503
    %v505 = vlaneseq
    %v506 = vshrl.u32 %v505, 7
    %v507 = vsub.s32 3, %v506
    %v508 = vrot.slane %v491, %v507
    %v509 = vlaneseq
    %v510 = vshrl.u32 %v509, 7
    %v511 = vsub.s32 4, %v510
    %v512 = vrot.slane %v491, %v511
    %v513 = vlaneseq
    %v514 = vshrl.u32 %v513, 7
    %v515 = vsub.s32 5, %v514
    %v516 = vrot.slane %v491, %v515
    %v517 = vlaneseq
    %v518 = vshrl.u32 %v517, 7
    %v519 = vsub.s32 6, %v518
    %v520 = vrot.slane %v491, %v519
    %v656 = vunpack.c.l.b16 %v363
    %v657 = vunpack.c.h.b16 %v363
    %v658 = vunpack.c.l.b16 %v364
    %v659 = vunpack.c.h.b16 %v364
    %v660 = vunpack.c.l.b16 %v365
    %v661 = vunpack.c.h.b16 %v365
    %v662 = vunpack.c.l.b16 %v366
    %v663 = vunpack.c.l.b16 %v367
    %v664 = vunpack.c.h.b16 %v367
    %v665 = vunpack.c.l.b16 %v368
    %v666 = vunpack.c.h.b16 %v368
    %v667 = vunpack.c.l.b16 %v369
    %v668 = vunpack.c.h.b16 %v369
    %v669 = vunpack.c.l.b16 %v370
    %v670 = vunpack.c.l.b16 %v371
    %v671 = vunpack.c.h.b16 %v371
    %v672 = vunpack.c.l.b16 %v372
    %v673 = vunpack.c.h.b16 %v372
    %v674 = vunpack.c.l.b16 %v373
    %v675 = vunpack.c.h.b16 %v373
    %v676 = vunpack.c.l.b16 %v374
    %v677 = vunpack.c.l.b16 %v375
    %v678 = vunpack.c.h.b16 %v375
    %v679 = vunpack.c.l.b16 %v376
    %v680 = vunpack.c.h.b16 %v376
    %v681 = vunpack.c.l.b16 %v377
    %v682 = vunpack.c.h.b16 %v377
    %v683 = vunpack.c.l.b16 %v378
    %v684 = vunpack.c.l.b16 %v379
    %v685 = vunpack.c.h.b16 %v379
    %v686 = vunpack.c.l.b16 %v380
    %v687 = vunpack.c.h.b16 %v380
    %v688 = vunpack.c.l.b16 %v381
    %v689 = vunpack.c.h.b16 %v381
    %v690 = vunpack.c.l.b16 %v382
    %v691 = vunpack.c.l.b16 %v383
    %v692 = vunpack.c.h.b16 %v383
    %v693 = vunpack.c.l.b16 %v384
    %v694 = vunpack.c.h.b16 %v384
    %v695 = vunpack.c.l.b16 %v385
    %v696 = vunpack.c.h.b16 %v385
    %v697 = vunpack.c.l.b16 %v386
    %v698 = vunpack.c.l.b16 %v387
    %v699 = vunpack.c.h.b16 %v387
    %v700 = vunpack.c.l.b16 %v388
    %v701 = vunpack.c.h.b16 %v388
    %v702 = vunpack.c.l.b16 %v389
    %v703 = vunpack.c.h.b16 %v389
    %v704 = vunpack.c.l.b16 %v390
    %v705 = vunpack.c.l.b16 %v391
    %v706 = vunpack.c.h.b16 %v391
    %v707 = vunpack.c.l.b16 %v392
    %v708 = vunpack.c.h.b16 %v392
    %v709 = vunpack.c.l.b16 %v393
    %v710 = vunpack.c.h.b16 %v393
    %v711 = vunpack.c.l.b16 %v394
    %v712 = vunpack.c.l.b16 %v395
    %v713 = vunpack.c.h.b16 %v395
    %v714 = vunpack.c.l.b16 %v396
    %v715 = vunpack.c.h.b16 %v396
    %v716 = vunpack.c.l.b16 %v397
    %v717 = vunpack.c.h.b16 %v397
    %v718 = vunpack.c.l.b16 %v398
    %v719 = vunpack.c.l.b16 %v399
    %v720 = vunpack.c.h.b16 %v399
    %v721 = vunpack.c.l.b16 %v400
    %v722 = vunpack.c.h.b16 %v400
    %v723 = vunpack.c.l.b16 %v401
    %v724 = vunpack.c.h.b16 %v401
    %v725 = vunpack.c.l.b16 %v402
    %v726 = vunpack.c.l.b16 %v403
    %v727 = vunpack.c.h.b16 %v403
    %v728 = vunpack.c.l.b16 %v404
    %v729 = vunpack.c.h.b16 %v404
    %v730 = vunpack.c.l.b16 %v405
    %v731 = vunpack.c.h.b16 %v405
    %v732 = vunpack.c.l.b16 %v406
    %v733 = vunpack.c.l.b16 %v407
    %v734 = vunpack.c.h.b16 %v407
    %v735 = vunpack.c.l.b16 %v408
    %v736 = vunpack.c.h.b16 %v408
    %v737 = vunpack.c.l.b16 %v409
    %v738 = vunpack.c.h.b16 %v409
    %v739 = vunpack.c.l.b16 %v410
    %v740 = vunpack.c.l.b16 %v411
    %v741 = vunpack.c.h.b16 %v411
    %v742 = vunpack.c.l.b16 %v412
    %v743 = vunpack.c.h.b16 %v412
    %v744 = vunpack.c.l.b16 %v413
    %v745 = vunpack.c.h.b16 %v413
    %v746 = vunpack.c.l.b16 %v414
    %v747 = vunpack.c.l.b16 %v415
    %v748 = vunpack.c.h.b16 %v415
    %v749 = vunpack.c.l.b16 %v416
    %v750 = vunpack.c.h.b16 %v416
    %v751 = vunpack.c.l.b16 %v417
    %v752 = vunpack.c.h.b16 %v417
    %v753 = vunpack.c.l.b16 %v418
    %v754 = vunpack.c.l.b16 %v419
    %v755 = vunpack.c.h.b16 %v419
    %v756 = vunpack.c.l.b16 %v420
    %v757 = vunpack.c.h.b16 %v420
    %v758 = vunpack.c.l.b16 %v421
    %v759 = vunpack.c.h.b16 %v421
    %v760 = vunpack.c.l.b16 %v422
    %v761 = vunpack.c.l.b16 %v423
    %v762 = vunpack.c.h.b16 %v423
    %v763 = vunpack.c.l.b16 %v424
    %v764 = vunpack.c.h.b16 %v424
    %v765 = vunpack.c.l.b16 %v425
    %v766 = vunpack.c.h.b16 %v425
    %v767 = vunpack.c.l.b16 %v426
    %v768 = vunpack.c.l.b16 %v427
    %v769 = vunpack.c.h.b16 %v427
    %v770 = vunpack.c.l.b16 %v428
    %v771 = vunpack.c.h.b16 %v428
    %v772 = vunpack.c.l.b16 %v429
    %v773 = vunpack.c.h.b16 %v429
    %v774 = vunpack.c.l.b16 %v430
    %v775 = vunpack.c.l.b16 %v431
    %v776 = vunpack.c.h.b16 %v431
    %v777 = vunpack.c.l.b16 %v432
    %v778 = vunpack.c.h.b16 %v432
    %v779 = vunpack.c.l.b16 %v433
    %v780 = vunpack.c.h.b16 %v433
    %v781 = vunpack.c.l.b16 %v434
    %v782 = vunpack.c.l.b16 %v435
    %v783 = vunpack.c.h.b16 %v435
    %v784 = vunpack.c.l.b16 %v436
    %v785 = vunpack.c.h.b16 %v436
    %v786 = vunpack.c.l.b16 %v437
    %v787 = vunpack.c.h.b16 %v437
    %v788 = vunpack.c.l.b16 %v438
    %v789 = vunpack.c.l.b16 %v439
    %v790 = vunpack.c.h.b16 %v439
    %v791 = vunpack.c.l.b16 %v440
    %v792 = vunpack.c.h.b16 %v440
    %v793 = vunpack.c.l.b16 %v441
    %v794 = vunpack.c.h.b16 %v441
    %v795 = vunpack.c.l.b16 %v442
    %v796 = vunpack.c.l.b16 %v443
    %v797 = vunpack.c.h.b16 %v443
    %v798 = vunpack.c.l.b16 %v444
    %v799 = vunpack.c.h.b16 %v444
    %v800 = vunpack.c.l.b16 %v445
    %v801 = vunpack.c.h.b16 %v445
    %v802 = vunpack.c.l.b16 %v446
    %v803 = vunpack.c.l.b16 %v447
    %v804 = vunpack.c.h.b16 %v447
    %v805 = vunpack.c.l.b16 %v448
    %v806 = vunpack.c.h.b16 %v448
    %v807 = vunpack.c.l.b16 %v449
    %v808 = vunpack.c.h.b16 %v449
    %v809 = vunpack.c.l.b16 %v450
    %v810 = vunpack.c.l.b16 %v451
    %v811 = vunpack.c.h.b16 %v451
    %v812 = vunpack.c.l.b16 %v452
    %v813 = vunpack.c.h.b16 %v452
    %v814 = vunpack.c.l.b16 %v453
    %v815 = vunpack.c.h.b16 %v453
    %v816 = vunpack.c.l.b16 %v454
    %v817 = vunpack.c.l.b16 %v455
    %v818 = vunpack.c.h.b16 %v455
    %v819 = vunpack.c.l.b16 %v456
    %v820 = vunpack.c.h.b16 %v456
    %v821 = vunpack.c.l.b16 %v457
    %v822 = vunpack.c.h.b16 %v457
    %v823 = vunpack.c.l.b16 %v458
    %v824 = vunpack.c.l.b16 %v459
    %v825 = vunpack.c.h.b16 %v459
    %v826 = vunpack.c.l.b16 %v460
    %v827 = vunpack.c.h.b16 %v460
    %v828 = vunpack.c.l.b16 %v461
    %v829 = vunpack.c.h.b16 %v461
    %v830 = vunpack.c.l.b16 %v462
    %v831 = vunpack.c.l.b16 %v463
    %v832 = vunpack.c.h.b16 %v463
    %v833 = vunpack.c.l.b16 %v464
    %v834 = vunpack.c.h.b16 %v464
    %v835 = vunpack.c.l.b16 %v465
    %v836 = vunpack.c.h.b16 %v465
    %v837 = vunpack.c.l.b16 %v466
    %v838 = vunpack.c.l.b16 %v467
    %v839 = vunpack.c.h.b16 %v467
    %v840 = vunpack.c.l.b16 %v468
    %v841 = vunpack.c.h.b16 %v468
    %v842 = vunpack.c.l.b16 %v469
    %v843 = vunpack.c.h.b16 %v469
    %v844 = vunpack.c.l.b16 %v470
    %v845 = vunpack.c.l.b16 %v471
    %v846 = vunpack.c.h.b16 %v471
    %v847 = vunpack.c.l.b16 %v472
    %v848 = vunpack.c.h.b16 %v472
    %v849 = vunpack.c.l.b16 %v473
    %v850 = vunpack.c.h.b16 %v473
    %v851 = vunpack.c.l.b16 %v474
    %v852 = vunpack.c.l.b16 %v475
    %v853 = vunpack.c.h.b16 %v475
    %v854 = vunpack.c.l.b16 %v476
    %v855 = vunpack.c.h.b16 %v476
    %v856 = vunpack.c.l.b16 %v477
    %v857 = vunpack.c.h.b16 %v477
    %v858 = vunpack.c.l.b16 %v478
    %v859 = vunpack.c.l.b16 %v479
    %v860 = vunpack.c.h.b16 %v479
    %v861 = vunpack.c.l.b16 %v480
    %v862 = vunpack.c.h.b16 %v480
    %v863 = vunpack.c.l.b16 %v481
    %v864 = vunpack.c.h.b16 %v481
    %v865 = vunpack.c.l.b16 %v482
    %v866 = vunpack.c.l.b16 %v483
    %v867 = vunpack.c.h.b16 %v483
    %v868 = vunpack.c.l.b16 %v484
    %v869 = vunpack.c.h.b16 %v484
    %v870 = vunpack.c.l.b16 %v485
    %v871 = vunpack.c.h.b16 %v485
    %v872 = vunpack.c.l.b16 %v486
    %v873 = vunpack.c.l.b16 %v487
    %v874 = vunpack.c.h.b16 %v487
    %v875 = vunpack.c.l.b16 %v488
    %v876 = vunpack.c.h.b16 %v488
    %v877 = vunpack.c.l.b16 %v489
    %v878 = vunpack.c.h.b16 %v489
    %v879 = vunpack.c.l.b16 %v490
    %v880 = vpack.c.b16 %v663, %v656
    %v881 = vpack.c.b16 %v664, %v657
    %v882 = vpack.c.b16 %v665, %v658
    %v883 = vpack.c.b16 %v666, %v659
    %v884 = vpack.c.b16 %v667, %v660
    %v885 = vpack.c.b16 %v668, %v661
    %v886 = vpack.c.b16 %v669, %v662
    %v887 = vpack.c.b16 %v677, %v670
    %v888 = vpack.c.b16 %v678, %v671
    %v889 = vpack.c.b16 %v679, %v672
    %v890 = vpack.c.b16 %v680, %v673
    %v891 = vpack.c.b16 %v681, %v674
    %v892 = vpack.c.b16 %v682, %v675
    %v893 = vpack.c.b16 %v683, %v676
    %v894 = vpack.c.b16 %v691, %v684
    %v895 = vpack.c.b16 %v692, %v685
    %v896 = vpack.c.b16 %v693, %v686
    %v897 = vpack.c.b16 %v694, %v687
    %v898 = vpack.c.b16 %v695, %v688
    %v899 = vpack.c.b16 %v696, %v689
    %v900 = vpack.c.b16 %v697, %v690
    %v901 = vpack.c.b16 %v705, %v698
    %v902 = vpack.c.b16 %v706, %v699
    %v903 = vpack.c.b16 %v707, %v700
    %v904 = vpack.c.b16 %v708, %v701
    %v905 = vpack.c.b16 %v709, %v702
    %v906 = vpack.c.b16 %v710, %v703
    %v907 = vpack.c.b16 %v711, %v704
    %v908 = vpack.c.b16 %v719, %v712
    %v909 = vpack.c.b16 %v720, %v713
    %v910 = vpack.c.b16 %v721, %v714
    %v911 = vpack.c.b16 %v722, %v715
    %v912 = vpack.c.b16 %v723, %v716
    %v913 = vpack.c.b16 %v724, %v717
    %v914 = vpack.c.b16 %v725, %v718
    %v915 = vpack.c.b16 %v733, %v726
    %v916 = vpack.c.b16 %v734, %v727
    %v917 = vpack.c.b16 %v735, %v728
    %v918 = vpack.c.b16 %v736, %v729
    %v919 = vpack.c.b16 %v737, %v730
    %v920 = vpack.c.b16 %v738, %v731
    %v921 = vpack.c.b16 %v739, %v732
    %v922 = vpack.c.b16 %v747, %v740
    %v923 = vpack.c.b16 %v748, %v741
    %v924 = vpack.c.b16 %v749, %v742
    %v925 = vpack.c.b16 %v750, %v743
    %v926 = vpack.c.b16 %v751, %v744
    %v927 = vpack.c.b16 %v752, %v745
    %v928 = vpack.c.b16 %v753, %v746
    %v929 = vpack.c.b16 %v761, %v754
    %v930 = vpack.c.b16 %v762, %v755
    %v931 = vpack.c.b16 %v763, %v756
    %v932 = vpack.c.b16 %v764, %v757
    %v933 = vpack.c.b16 %v765, %v758
    %v934 = vpack.c.b16 %v766, %v759
    %v935 = vpack.c.b16 %v767, %v760
    %v936 = vpack.c.b16 %v775, %v768
    %v937 = vpack.c.b16 %v776, %v769
    %v938 = vpack.c.b16 %v777, %v770
    %v939 = vpack.c.b16 %v778, %v771
    %v940 = vpack.c.b16 %v779, %v772
    %v941 = vpack.c.b16 %v780, %v773
    %v942 = vpack.c.b16 %v781, %v774
    %v943 = vpack.c.b16 %v789, %v782
    %v944 = vpack.c.b16 %v790, %v783
    %v945 = vpack.c.b16 %v791, %v784
    %v946 = vpack.c.b16 %v792, %v785
    %v947 = vpack.c.b16 %v793, %v786
    %v948 = vpack.c.b16 %v794, %v787
    %v949 = vpack.c.b16 %v795, %v788
    %v950 = vpack.c.b16 %v803, %v796
    %v951 = vpack.c.b16 %v804, %v797
    %v952 = vpack.c.b16 %v805, %v798
    %v953 = vpack.c.b16 %v806, %v799
    %v954 = vpack.c.b16 %v807, %v800
    %v955 = vpack.c.b16 %v808, %v801
    %v956 = vpack.c.b16 %v809, %v802
    %v957 = vpack.c.b16 %v817, %v810
    %v958 = vpack.c.b16 %v818, %v811
    %v959 = vpack.c.b16 %v819, %v812
    %v960 = vpack.c.b16 %v820, %v813
    %v961 = vpack.c.b16 %v821, %v814
    %v962 = vpack.c.b16 %v822, %v815
    %v963 = vpack.c.b16 %v823, %v816
    %v964 = vpack.c.b16 %v831, %v824
    %v965 = vpack.c.b16 %v832, %v825
    %v966 = vpack.c.b16 %v833, %v826
    %v967 = vpack.c.b16 %v834, %v827
    %v968 = vpack.c.b16 %v835, %v828
    %v969 = vpack.c.b16 %v836, %v829
    %v970 = vpack.c.b16 %v837, %v830
    %v971 = vpack.c.b16 %v845, %v838
    %v972 = vpack.c.b16 %v846, %v839
    %v973 = vpack.c.b16 %v847, %v840
    %v974 = vpack.c.b16 %v848, %v841
    %v975 = vpack.c.b16 %v849, %v842
    %v976 = vpack.c.b16 %v850, %v843
    %v977 = vpack.c.b16 %v851, %v844
    %v978 = vpack.c.b16 %v859, %v852
    %v979 = vpack.c.b16 %v860, %v853
    %v980 = vpack.c.b16 %v861, %v854
    %v981 = vpack.c.b16 %v862, %v855
    %v982 = vpack.c.b16 %v863, %v856
    %v983 = vpack.c.b16 %v864, %v857
    %v984 = vpack.c.b16 %v865, %v858
    %v985 = vpack.c.b16 %v873, %v866
    %v986 = vpack.c.b16 %v874, %v867
    %v987 = vpack.c.b16 %v875, %v868
    %v988 = vpack.c.b16 %v876, %v869
    %v989 = vpack.c.b16 %v877, %v870
    %v990 = vpack.c.b16 %v878, %v871
    %v991 = vpack.c.b16 %v879, %v872
    %1104 = vmatprep.subr.bf16.mxu0 %v881
    %1105 = vmatpush1.bf16.msra.mxu0 %v880
    %1106 = vmatprep.subr.bf16.mxu0 %v888
    %1107 = vmatpush1.bf16.msra.mxu0 %v887
    %1108 = vmatprep.subr.bf16.mxu0 %v895
    %1109 = vmatpush1.bf16.msra.mxu0 %v894
    %1110 = vmatprep.subr.bf16.mxu0 %v902
    %1111 = vmatpush1.bf16.msra.mxu0 %v901
    %1112 = vmatprep.subr.bf16.mxu0 %v909
    %1113 = vmatpush1.bf16.msra.mxu0 %v908
    %1114 = vmatprep.subr.bf16.mxu0 %v916
    %1115 = vmatpush1.bf16.msra.mxu0 %v915
    %1116 = vmatprep.subr.bf16.mxu0 %v923
    %1117 = vmatpush1.bf16.msra.mxu0 %v922
    %1118 = vmatprep.subr.bf16.mxu0 %v930
    %1119 = vmatpush1.bf16.msra.mxu0 %v929
    %1120 = vmatprep.subr.bf16.mxu0 %v937
    %1121 = vmatpush1.bf16.msra.mxu0 %v936
    %1122 = vmatprep.subr.bf16.mxu0 %v944
    %1123 = vmatpush1.bf16.msra.mxu0 %v943
    %1124 = vmatprep.subr.bf16.mxu0 %v951
    %1125 = vmatpush1.bf16.msra.mxu0 %v950
    %1126 = vmatprep.subr.bf16.mxu0 %v958
    %1127 = vmatpush1.bf16.msra.mxu0 %v957
    %1128 = vmatprep.subr.bf16.mxu0 %v965
    %1129 = vmatpush1.bf16.msra.mxu0 %v964
    %1130 = vmatprep.subr.bf16.mxu0 %v972
    %1131 = vmatpush1.bf16.msra.mxu0 %v971
    %1132 = vmatprep.subr.bf16.mxu0 %v979
    %1133 = vmatpush1.bf16.msra.mxu0 %v978
    %1134 = vmatprep.subr.bf16.mxu0 %v986
    %1135 = vmatpush1.bf16.msra.mxu0 %v985
    %1136 = vmatprep.mubr.bf16.mxu0 %v362
    %1137 = vmatmul.mubr.bf16.gmra.mrb[0].mxu0 %v361
    %v1138 = vpop.f32.mrb[0].mxu0
    %v1139 = vadd.f32 %v496, %v1138
    %v1140 = vpop.f32.mrb[0].mxu0
    %v1141 = vadd.f32 %v500, %v1140
    %v1142 = vpop.f32.mrb[0].mxu0
    %v1143 = vpop.f32.mrb[0].mxu0
    %1144 = vdwg.mxu0
    %1145 = vmatprep.subr.bf16.mxu0 %v883
    %1146 = vmatpush1.bf16.msra.mxu0 %v882
    %1147 = vmatprep.subr.bf16.mxu0 %v890
    %1148 = vmatpush1.bf16.msra.mxu0 %v889
    %1149 = vmatprep.subr.bf16.mxu0 %v897
    %1150 = vmatpush1.bf16.msra.mxu0 %v896
    %1151 = vmatprep.subr.bf16.mxu0 %v904
    %1152 = vmatpush1.bf16.msra.mxu0 %v903
    %1153 = vmatprep.subr.bf16.mxu0 %v911
    %1154 = vmatpush1.bf16.msra.mxu0 %v910
    %1155 = vmatprep.subr.bf16.mxu0 %v918
    %1156 = vmatpush1.bf16.msra.mxu0 %v917
    %1157 = vmatprep.subr.bf16.mxu0 %v925
    %1158 = vmatpush1.bf16.msra.mxu0 %v924
    %1159 = vmatprep.subr.bf16.mxu0 %v932
    %1160 = vmatpush1.bf16.msra.mxu0 %v931
    %1161 = vmatprep.subr.bf16.mxu0 %v939
    %1162 = vmatpush1.bf16.msra.mxu0 %v938
    %1163 = vmatprep.subr.bf16.mxu0 %v946
    %1164 = vmatpush1.bf16.msra.mxu0 %v945
    %1165 = vmatprep.subr.bf16.mxu0 %v953
    %1166 = vmatpush1.bf16.msra.mxu0 %v952
    %1167 = vmatprep.subr.bf16.mxu0 %v960
    %1168 = vmatpush1.bf16.msra.mxu0 %v959
    %1169 = vmatprep.subr.bf16.mxu0 %v967
    %1170 = vmatpush1.bf16.msra.mxu0 %v966
    %1171 = vmatprep.subr.bf16.mxu0 %v974
    %1172 = vmatpush1.bf16.msra.mxu0 %v973
    %1173 = vmatprep.subr.bf16.mxu0 %v981
    %1174 = vmatpush1.bf16.msra.mxu0 %v980
    %1175 = vmatprep.subr.bf16.mxu0 %v988
    %1176 = vmatpush1.bf16.msra.mxu0 %v987
    %1177 = vmatprep.mubr.bf16.mxu0 %v362
    %1178 = vmatmul.mubr.bf16.gmra.mrb[0].mxu0 %v361
    %v1179 = vpop.f32.mrb[0].mxu0
    %v1180 = vadd.f32 %v504, %v1179
    %v1181 = vpop.f32.mrb[0].mxu0
    %v1182 = vadd.f32 %v508, %v1181
    %v1183 = vpop.f32.mrb[0].mxu0
    %v1184 = vpop.f32.mrb[0].mxu0
    %1185 = vdwg.mxu0
    %1186 = vmatprep.subr.bf16.mxu0 %v885
    %1187 = vmatpush1.bf16.msra.mxu0 %v884
    %1188 = vmatprep.subr.bf16.mxu0 %v892
    %1189 = vmatpush1.bf16.msra.mxu0 %v891
    %1190 = vmatprep.subr.bf16.mxu0 %v899
    %1191 = vmatpush1.bf16.msra.mxu0 %v898
    %1192 = vmatprep.subr.bf16.mxu0 %v906
    %1193 = vmatpush1.bf16.msra.mxu0 %v905
    %1194 = vmatprep.subr.bf16.mxu0 %v913
    %1195 = vmatpush1.bf16.msra.mxu0 %v912
    %1196 = vmatprep.subr.bf16.mxu0 %v920
    %1197 = vmatpush1.bf16.msra.mxu0 %v919
    %1198 = vmatprep.subr.bf16.mxu0 %v927
    %1199 = vmatpush1.bf16.msra.mxu0 %v926
    %1200 = vmatprep.subr.bf16.mxu0 %v934
    %1201 = vmatpush1.bf16.msra.mxu0 %v933
    %1202 = vmatprep.subr.bf16.mxu0 %v941
    %1203 = vmatpush1.bf16.msra.mxu0 %v940
    %1204 = vmatprep.subr.bf16.mxu0 %v948
    %1205 = vmatpush1.bf16.msra.mxu0 %v947
    %1206 = vmatprep.subr.bf16.mxu0 %v955
    %1207 = vmatpush1.bf16.msra.mxu0 %v954
    %1208 = vmatprep.subr.bf16.mxu0 %v962
    %1209 = vmatpush1.bf16.msra.mxu0 %v961
    %1210 = vmatprep.subr.bf16.mxu0 %v969
    %1211 = vmatpush1.bf16.msra.mxu0 %v968
    %1212 = vmatprep.subr.bf16.mxu0 %v976
    %1213 = vmatpush1.bf16.msra.mxu0 %v975
    %1214 = vmatprep.subr.bf16.mxu0 %v983
    %1215 = vmatpush1.bf16.msra.mxu0 %v982
    %1216 = vmatprep.subr.bf16.mxu0 %v990
    %1217 = vmatpush1.bf16.msra.mxu0 %v989
    %1218 = vmatprep.mubr.bf16.mxu0 %v362
    %1219 = vmatmul.mubr.bf16.gmra.mrb[0].mxu0 %v361
    %v1220 = vpop.f32.mrb[0].mxu0
    %v1221 = vadd.f32 %v512, %v1220
    %v1222 = vpop.f32.mrb[0].mxu0
    %v1223 = vadd.f32 %v516, %v1222
    %v1224 = vpop.f32.mrb[0].mxu0
    %v1225 = vpop.f32.mrb[0].mxu0
    %1226 = vdwg.mxu0
    %1227 = vmatprep.subr.bf16.mxu0 0
    %1228 = vmatpush1.bf16.msra.mxu0 %v886
    %1229 = vmatprep.subr.bf16.mxu0 0
    %1230 = vmatpush1.bf16.msra.mxu0 %v893
    %1231 = vmatprep.subr.bf16.mxu0 0
    %1232 = vmatpush1.bf16.msra.mxu0 %v900
    %1233 = vmatprep.subr.bf16.mxu0 0
    %1234 = vmatpush1.bf16.msra.mxu0 %v907
    %1235 = vmatprep.subr.bf16.mxu0 0
    %1236 = vmatpush1.bf16.msra.mxu0 %v914
    %1237 = vmatprep.subr.bf16.mxu0 0
    %1238 = vmatpush1.bf16.msra.mxu0 %v921
    %1239 = vmatprep.subr.bf16.mxu0 0
    %1240 = vmatpush1.bf16.msra.mxu0 %v928
    %1241 = vmatprep.subr.bf16.mxu0 0
    %1242 = vmatpush1.bf16.msra.mxu0 %v935
    %1243 = vmatprep.subr.bf16.mxu0 0
    %1244 = vmatpush1.bf16.msra.mxu0 %v942
    %1245 = vmatprep.subr.bf16.mxu0 0
    %1246 = vmatpush1.bf16.msra.mxu0 %v949
    %1247 = vmatprep.subr.bf16.mxu0 0
    %1248 = vmatpush1.bf16.msra.mxu0 %v956
    %1249 = vmatprep.subr.bf16.mxu0 0
    %1250 = vmatpush1.bf16.msra.mxu0 %v963
    %1251 = vmatprep.subr.bf16.mxu0 0
    %1252 = vmatpush1.bf16.msra.mxu0 %v970
    %1253 = vmatprep.subr.bf16.mxu0 0
    %1254 = vmatpush1.bf16.msra.mxu0 %v977
    %1255 = vmatprep.subr.bf16.mxu0 0
    %1256 = vmatpush1.bf16.msra.mxu0 %v984
    %1257 = vmatprep.subr.bf16.mxu0 0
    %1258 = vmatpush1.bf16.msra.mxu0 %v991
    %1259 = vmatprep.mubr.bf16.mxu0 %v362
    %1260 = vmatmul.mubr.bf16.gmra.mrb[0].mxu0 %v361
    %v1261 = vpop.f32.mrb[0].mxu0
    %v1262 = vadd.f32 %v520, %v1261
    %v1263 = vpop.f32.mrb[0].mxu0
    %v1264 = vpop.f32.mrb[0].mxu0
    %v1265 = vpop.f32.mrb[0].mxu0
    %1266 = vdwg.mxu0
    %v1267 = vtanh.pop %v1139
    %v1268 = vtanh.pop %v1141
    %v1269 = vtanh.pop %v1180
    %v1270 = vtanh.pop %v1182
    %v1271 = vtanh.pop %v1221
    %v1272 = vtanh.pop %v1223
    %v1273 = vtanh.pop %v1262
    %v1274 = vpack.c.bf16 %v1267, %v1267
    %v1275 = vpack.c.bf16 %v1268, %v1268
    %v1276 = vpack.c.bf16 %v1269, %v1269
    %v1277 = vpack.c.bf16 %v1270, %v1270
    %v1278 = vpack.c.bf16 %v1271, %v1271
    %v1279 = vpack.c.bf16 %v1272, %v1272
    %v1280 = vpack.c.bf16 %v1273, %v1273
    %v1288 = vunpack.c.l.b16 %v1274
    %v1289 = vunpack.c.l.b16 %v1275
    %v1290 = vunpack.c.l.b16 %v1276
    %v1291 = vunpack.c.l.b16 %v1277
    %v1292 = vunpack.c.l.b16 %v1278
    %v1293 = vunpack.c.l.b16 %v1279
    %v1294 = vunpack.c.l.b16 %v1280
    %v1295 = vpack.c.b16 %v1289, %v1288
    %v1296 = vpack.c.b16 %v1291, %v1290
    %v1297 = vpack.c.b16 %v1293, %v1292
    %v1298 = vpack.c.b16 %v1294, %v1294
    %1303 = vst [vmem:[#allocation2] sm:$0xff] %v1295
    %1304 = vst [vmem:[#allocation2 + $0x8] sm:$0xff] %v1296
    %1305 = vst [vmem:[#allocation2 + $0x10] sm:$0xff] %v1297
    %vm1306 = vcmask 125952
    %1307 = vst.msk [vmem:[#allocation2 + $0x18] sm:$0xf] %vm1306, %v1298
    // Predicated region
    $region30: #{tpu_custom_call.1} parent=1 // pred_check
      _
    $region31: #{tpu_custom_call.1} parent=1 // pred_check_branch
      %1309 = sbr.rel (0) target = $region33
    $region32: #{tpu_custom_call.1} parent=1 // pred_region
      %s1311 = ssub.s32 448, 448
      %1312 = vsyncadd [#allocation3], %s1311
      %s1314 = sshll.u32 [#allocation2], 4
      %s1315 = int_to_ptr.vmem [resolvable:$true] %s1314
      %1317 = dma.vmem_to_hbm [thread:$0]  %s1315, 448, %s7, [#allocation3]
    $region33: #{tpu_custom_call.1} parent=1 // pred_fallthru
      _
    // Predicated region
    $region34: #{tpu_custom_call.1} parent=1 // pred_check
      _
    $region35: #{tpu_custom_call.1} parent=1 // pred_check_branch
      %1319 = sbr.rel (0) target = $region37
    $region36: #{tpu_custom_call.1} parent=1 // pred_region
      %1320 = dma.done [#allocation3], 448
    $region37: #{tpu_custom_call.1} parent=1 // pred_fallthru
      _
    %1321 = vsyncpa [#allocation3], 1

</llo_original>
